<compile_context>
chip_gen: v6e
topology: v6e:2x2x1
jax: 0.10.0
libtpu: 0.0.40
codegen_flags: <defaults>
</compile_context>

<pallas_src>
import functools

import jax
import jax.numpy as jnp
from jax.experimental import pallas as pl
from jax.experimental.pallas import tpu as pltpu

_LANE = 128
_NEG_BIG = -1e30


def router_kernel(x_ref, w_ref, b_ref, o_ref, *, topk: int):
    # x_ref: (TB, H)   w_ref: (H, Cp) pre-transposed   b_ref: (1, Cp)
    # o_ref: (TB, Cp)  -- Cp is the lane-padded class count, dtype = x.dtype.
    x = x_ref[...]
    w = w_ref[...]
    b = b_ref[...]

    # Linear: preds = x @ W^T + b  (weight already transposed & padded; MXU, f32 acc).
    preds = jnp.dot(x, w, preferred_element_type=jnp.float32) + b

    # Softmax over the class (lane) axis. Padded lanes carry bias -1e30 -> exp
    # underflows to exactly 0, contributing nothing to the denominator.
    m = jnp.max(preds, axis=-1, keepdims=True)
    e = jnp.exp(preds - m)
    denom = jnp.sum(e, axis=-1, keepdims=True)
    # EUP approximate reciprocal + one Newton step (~1e-7 relative error).
    inv = pl.reciprocal(denom, approx=True)
    inv = inv * (2.0 - denom * inv)
    sm = e * inv

    # Top-k mask via iterative argmax (topk is small & static).
    # Ties resolved by lowest index, so real classes always beat padded ones
    # (padded classes have sm == 0 < any real class's prob while topk <= C).
    cp = sm.shape[-1]
    col = jax.lax.broadcasted_iota(jnp.int32, sm.shape, 1)
    work = sm
    keep = jnp.zeros(sm.shape, dtype=jnp.bool_)
    for _ in range(topk):
        cur_max = jnp.max(work, axis=-1, keepdims=True)
        is_max = work == cur_max
        first_idx = jnp.min(jnp.where(is_max, col, cp), axis=-1, keepdims=True)
        sel = col == first_idx
        keep = keep | sel
        work = jnp.where(sel, -1.0, work)  # softmax probs are >= 0

    o_ref[...] = jnp.where(keep, sm, 0.0).astype(o_ref.dtype)


def _vmem_capacity_bytes() -> int:
    """Physical per-core VMEM; conservative v7x default if the query fails."""
    try:
        cap = int(getattr(pltpu.get_tpu_info(), "vmem_capacity_bytes", 0))
        if cap > 0:
            return cap
    except Exception:
        pass
    return 64 << 20


def prepare_router_params(weight, bias):
    """Pre-transpose & lane-pad the Linear params. Call ONCE per weight.

    weight: (C, H) in PyTorch Linear layout, bias: (C,).
    Returns (w_t, b_p, num_classes): w_t is (H, Cp) with Cp a multiple of 128,
    b_p is (1, Cp) with padded classes biased to -1e30 so they vanish in the
    softmax and can never win the top-k.
    """
    C, H = weight.shape
    Cp = max(_LANE, ((C + _LANE - 1) // _LANE) * _LANE)
    w_t = jnp.zeros((H, Cp), jnp.float32).at[:, :C].set(
        weight.astype(jnp.float32).T)
    b_p = jnp.full((1, Cp), _NEG_BIG, dtype=jnp.float32).at[:, :C].set(
        bias.astype(jnp.float32).reshape(1, C))
    return w_t, b_p, C


def _pick_tb(batch: int, hidden: int, c_padded: int, budget: int) -> int:
    """Largest power-of-two batch tile that fits the VMEM budget.

    Prefers >= 4 grid steps when the batch allows (>= 2 per TensorCore once a
    v7x megacore shards the single "parallel" axis), so both cores keep
    DMA/compute overlap; otherwise >= 2 steps.
    """
    b8 = max(8, ((batch + 7) // 8) * 8)
    if b8 >= 32:
        cap = max(8, b8 // 4)
    elif b8 >= 16:
        cap = max(8, b8 // 2)
    else:
        cap = b8
    for cand in (2048, 1024, 512, 256, 128, 64, 32, 16, 8):
        if cand > cap:
            continue
        tile_bytes = (
            2 * cand * hidden * 4          # double-buffered x tiles
            + 2 * cand * c_padded * 4      # double-buffered out tiles (<= f32)
            + 2 * hidden * c_padded * 4    # resident weight (compiler 2x-buffers)
            + 2 * 8 * c_padded * 4         # bias
            + 7 * cand * c_padded * 4      # in-kernel temporaries (preds/e/sm/...)
        )
        if tile_bytes <= budget:
            return cand
    return 8


def router_forward(x, w_t, b_p, num_classes: int, topk: int, *,
                   tb: int | None = None, return_padded: bool = False):
    """x: (B, H); w_t (H, Cp) / b_p (1, Cp) from prepare_router_params.

    Returns (B, num_classes) masked gates in x.dtype (softmax probs kept only
    at the top-k classes), or the lane-padded (B, Cp) array if return_padded.
    """
    B, H = x.shape
    Hw, Cp = w_t.shape
    assert Hw == H
    assert 1 < topk <= num_classes

    vmem_cap = _vmem_capacity_bytes()
    budget = (vmem_cap * 3) // 4          # ~96 MiB on v5e/v6e, ~48 MiB on v7x
    if tb is None:
        tb = _pick_tb(B, H, Cp, budget)

    out_dtype = x.dtype
    out_bytes = jnp.dtype(out_dtype).itemsize
    # Footprint estimate: double-buffered x/out tiles + resident weight/bias
    # (double-buffered by the pipeline) + in-kernel temporaries + headroom.
    est_vmem = (2 * tb * H * jnp.dtype(x.dtype).itemsize
                + 2 * tb * Cp * out_bytes
                + 2 * H * Cp * 4
                + 2 * 8 * Cp * 4
                + 7 * tb * Cp * 4
                + (2 << 20))
    vmem_limit = int(min(max(est_vmem, 32 << 20), vmem_cap - (8 << 20)))

    out = pl.pallas_call(
        functools.partial(router_kernel, topk=topk),
        out_shape=jax.ShapeDtypeStruct((B, Cp), out_dtype),
        grid_spec=pltpu.PrefetchScalarGridSpec(
            num_scalar_prefetch=0,
            grid=(pl.cdiv(B, tb),),              # ragged last block handled by Pallas
            in_specs=[
                pl.BlockSpec((tb, H), lambda i: (i, 0)),    # x tile
                pl.BlockSpec((H, Cp), lambda i: (0, 0)),    # pre-transposed W (resident)
                pl.BlockSpec((1, Cp), lambda i: (0, 0)),    # padded bias (resident)
            ],
            out_specs=pl.BlockSpec((tb, Cp), lambda i: (i, 0)),
        ),
        compiler_params=pltpu.CompilerParams(
            dimension_semantics=("parallel",),
            vmem_limit_bytes=vmem_limit,
        ),
    )(x, w_t, b_p)

    if return_padded or Cp == num_classes:
        return out
    # Wrapper-side class-padding slice (skip via return_padded when C << 128).
    return out[:, :num_classes]


def router_apply(x, weight, bias, topk: int, **kwargs):
    """One-shot convenience (prepares params every call).

    For repeated calls with the same weights, call prepare_router_params once
    and reuse its outputs with router_forward to avoid per-call HBM traffic.
    """
    w_t, b_p, C = prepare_router_params(weight, bias)
    return router_forward(x, w_t, b_p, C, topk, **kwargs)


def router_reference(x, weight, bias, topk: int):
    preds = x @ weight.T + bias
    sm = jax.nn.softmax(preds, axis=-1)
    probs, idx = jax.lax.top_k(sm, topk)
    out = jnp.zeros_like(sm)
    batch_idx = jnp.arange(sm.shape[0])[:, None]
    return out.at[batch_idx, idx].set(probs)


if __name__ == "__main__":
    key = jax.random.PRNGKey(0)
    batch, hidden_size, num_classes, topk = 16, 32, 16, 4

    kx, kw, kb = jax.random.split(key, 3)
    x = jax.random.normal(kx, (batch, hidden_size), dtype=jnp.float32)
    # Deterministic "kaiming-ish" init for the Linear layer.
    bound = 1.0 / (hidden_size ** 0.5)
    weight = jax.random.uniform(
        kw, (num_classes, hidden_size), minval=-bound, maxval=bound,
        dtype=jnp.float32)
    bias = jax.random.uniform(
        kb, (num_classes,), minval=-bound, maxval=bound, dtype=jnp.float32)

    # Prepare once per weight (hoisted transpose/pad), then run the kernel.
    w_t, b_p, c = prepare_router_params(weight, bias)

    out = jax.block_until_ready(router_forward(x, w_t, b_p, c, topk))
    ref = router_reference(x, weight, bias, topk)
    assert out.shape == ref.shape and out.dtype == x.dtype
    assert jnp.allclose(out, ref, atol=1e-5, rtol=1e-5), "mismatch vs reference"

    # Ragged-batch path: no wrapper-side pad copy; Pallas bounds the last block.
    x2 = x[:13]
    out2 = jax.block_until_ready(router_forward(x2, w_t, b_p, c, topk))
    ref2 = router_reference(x2, weight, bias, topk)
    assert jnp.allclose(out2, ref2, atol=1e-5, rtol=1e-5), "ragged-batch mismatch"

    print("KERNEL_OK")
</pallas_src>

<mosaic_0001>
module attributes {stable_mosaic.version = 11 : i64} {
  func.func @router_kernel(%arg0: i32, %arg1: memref<8x32xf32, #tpu.memory_space<vmem>>, %arg2: memref<32x128xf32, #tpu.memory_space<vmem>>, %arg3: memref<1x128xf32, #tpu.memory_space<vmem>>, %arg4: memref<8x128xf32, #tpu.memory_space<vmem>>) attributes {dimension_semantics = [#tpu.dimension_semantics<parallel>], iteration_bounds = array<i64: 2>, scalar_prefetch = 0 : i64, scratch_operands = 0 : i64, tpu.core_type = #tpu.core_type<tc>, window_params = [{transform_indices = @transform_0, window_bounds = array<i64: 8, 32>}, {pipeline_mode = #tpu.pipeline_mode<synchronous>, transform_indices = @transform_1, window_bounds = array<i64: 32, 128>}, {pipeline_mode = #tpu.pipeline_mode<synchronous>, transform_indices = @transform_2, window_bounds = array<i64: 1, 128>}, {transform_indices = @transform_3, window_bounds = array<i64: 8, 128>}]} {
    %c0 = arith.constant 0 : index
    %c0_0 = arith.constant 0 : index
    %0 = vector.load %arg1[%c0, %c0_0] : memref<8x32xf32, #tpu.memory_space<vmem>>, vector<8x32xf32>
    %c0_1 = arith.constant 0 : index
    %c0_2 = arith.constant 0 : index
    %1 = vector.load %arg2[%c0_1, %c0_2] : memref<32x128xf32, #tpu.memory_space<vmem>>, vector<32x128xf32>
    %c0_3 = arith.constant 0 : index
    %c0_4 = arith.constant 0 : index
    %2 = vector.load %arg3[%c0_3, %c0_4] : memref<1x128xf32, #tpu.memory_space<vmem>>, vector<1x128xf32>
    %cst = arith.constant dense<0.000000e+00> : vector<8x128xf32>
    %3 = tpu.matmul %0, %1, %cst {dimension_numbers = #tpu.dot_dimension_numbers<[1], [0], [0], [1], [0, 0, 1, 1], [], []>} : vector<8x32xf32>, vector<32x128xf32>, vector<8x128xf32> -> vector<8x128xf32>
    %4 = vector.broadcast %2 : vector<1x128xf32> to vector<8x128xf32>
    %5 = arith.addf %3, %4 : vector<8x128xf32>
    %cst_5 = arith.constant dense<0xFF800000> : vector<8xf32>
    %6 = vector.multi_reduction <maximumf>, %5, %cst_5 [1] : vector<8x128xf32> to vector<8xf32>
    %7 = vector.shape_cast %6 : vector<8xf32> to vector<8x1xf32>
    %8 = vector.broadcast %7 : vector<8x1xf32> to vector<8x128xf32>
    %9 = arith.subf %5, %8 : vector<8x128xf32>
    %10 = math.exp %9 : vector<8x128xf32>
    %cst_6 = arith.constant dense<0.000000e+00> : vector<8xf32>
    %11 = vector.multi_reduction <add>, %10, %cst_6 [1] : vector<8x128xf32> to vector<8xf32>
    %12 = vector.shape_cast %11 : vector<8xf32> to vector<8x1xf32>
    %13 = tpu.reciprocal %12 {approx = true} : vector<8x1xf32> -> vector<8x1xf32>
    %14 = arith.mulf %12, %13 : vector<8x1xf32>
    %cst_7 = arith.constant 2.000000e+00 : f32
    %15 = vector.broadcast %cst_7 : f32 to vector<8x1xf32>
    %16 = arith.subf %15, %14 : vector<8x1xf32>
    %17 = arith.mulf %13, %16 : vector<8x1xf32>
    %18 = vector.broadcast %17 : vector<8x1xf32> to vector<8x128xf32>
    %19 = arith.mulf %10, %18 : vector<8x128xf32>
    %20 = tpu.iota {dimensions = array<i32: 1>} : vector<8x128xi32>
    %false = arith.constant false
    %21 = vector.broadcast %false : i1 to vector<8x128xi1>
    %cst_8 = arith.constant dense<0xFF800000> : vector<8xf32>
    %22 = vector.multi_reduction <maximumf>, %19, %cst_8 [1] : vector<8x128xf32> to vector<8xf32>
    %23 = vector.shape_cast %22 : vector<8xf32> to vector<8x1xf32>
    %24 = vector.broadcast %23 : vector<8x1xf32> to vector<8x128xf32>
    %25 = arith.cmpf oeq, %19, %24 : vector<8x128xf32>
    %c128_i32 = arith.constant 128 : i32
    %26 = vector.broadcast %c128_i32 : i32 to vector<8x128xi32>
    %27 = arith.select %25, %20, %26 : vector<8x128xi1>, vector<8x128xi32>
    %cst_9 = arith.constant dense<2147483647> : vector<8xi32>
    %28 = vector.multi_reduction <minsi>, %27, %cst_9 [1] : vector<8x128xi32> to vector<8xi32>
    %29 = vector.shape_cast %28 : vector<8xi32> to vector<8x1xi32>
    %30 = vector.broadcast %29 : vector<8x1xi32> to vector<8x128xi32>
    %31 = arith.cmpi eq, %20, %30 : vector<8x128xi32>
    %32 = arith.ori %21, %31 : vector<8x128xi1>
    %cst_10 = arith.constant -1.000000e+00 : f32
    %33 = vector.broadcast %cst_10 : f32 to vector<8x128xf32>
    %34 = arith.select %31, %33, %19 : vector<8x128xi1>, vector<8x128xf32>
    %cst_11 = arith.constant dense<0xFF800000> : vector<8xf32>
    %35 = vector.multi_reduction <maximumf>, %34, %cst_11 [1] : vector<8x128xf32> to vector<8xf32>
    %36 = vector.shape_cast %35 : vector<8xf32> to vector<8x1xf32>
    %37 = vector.broadcast %36 : vector<8x1xf32> to vector<8x128xf32>
    %38 = arith.cmpf oeq, %34, %37 : vector<8x128xf32>
    %c128_i32_12 = arith.constant 128 : i32
    %39 = vector.broadcast %c128_i32_12 : i32 to vector<8x128xi32>
    %40 = arith.select %38, %20, %39 : vector<8x128xi1>, vector<8x128xi32>
    %cst_13 = arith.constant dense<2147483647> : vector<8xi32>
    %41 = vector.multi_reduction <minsi>, %40, %cst_13 [1] : vector<8x128xi32> to vector<8xi32>
    %42 = vector.shape_cast %41 : vector<8xi32> to vector<8x1xi32>
    %43 = vector.broadcast %42 : vector<8x1xi32> to vector<8x128xi32>
    %44 = arith.cmpi eq, %20, %43 : vector<8x128xi32>
    %45 = arith.ori %32, %44 : vector<8x128xi1>
    %cst_14 = arith.constant -1.000000e+00 : f32
    %46 = vector.broadcast %cst_14 : f32 to vector<8x128xf32>
    %47 = arith.select %44, %46, %34 : vector<8x128xi1>, vector<8x128xf32>
    %cst_15 = arith.constant dense<0xFF800000> : vector<8xf32>
    %48 = vector.multi_reduction <maximumf>, %47, %cst_15 [1] : vector<8x128xf32> to vector<8xf32>
    %49 = vector.shape_cast %48 : vector<8xf32> to vector<8x1xf32>
    %50 = vector.broadcast %49 : vector<8x1xf32> to vector<8x128xf32>
    %51 = arith.cmpf oeq, %47, %50 : vector<8x128xf32>
    %c128_i32_16 = arith.constant 128 : i32
    %52 = vector.broadcast %c128_i32_16 : i32 to vector<8x128xi32>
    %53 = arith.select %51, %20, %52 : vector<8x128xi1>, vector<8x128xi32>
    %cst_17 = arith.constant dense<2147483647> : vector<8xi32>
    %54 = vector.multi_reduction <minsi>, %53, %cst_17 [1] : vector<8x128xi32> to vector<8xi32>
    %55 = vector.shape_cast %54 : vector<8xi32> to vector<8x1xi32>
    %56 = vector.broadcast %55 : vector<8x1xi32> to vector<8x128xi32>
    %57 = arith.cmpi eq, %20, %56 : vector<8x128xi32>
    %58 = arith.ori %45, %57 : vector<8x128xi1>
    %cst_18 = arith.constant -1.000000e+00 : f32
    %59 = vector.broadcast %cst_18 : f32 to vector<8x128xf32>
    %60 = arith.select %57, %59, %47 : vector<8x128xi1>, vector<8x128xf32>
    %cst_19 = arith.constant dense<0xFF800000> : vector<8xf32>
    %61 = vector.multi_reduction <maximumf>, %60, %cst_19 [1] : vector<8x128xf32> to vector<8xf32>
    %62 = vector.shape_cast %61 : vector<8xf32> to vector<8x1xf32>
    %63 = vector.broadcast %62 : vector<8x1xf32> to vector<8x128xf32>
    %64 = arith.cmpf oeq, %60, %63 : vector<8x128xf32>
    %c128_i32_20 = arith.constant 128 : i32
    %65 = vector.broadcast %c128_i32_20 : i32 to vector<8x128xi32>
    %66 = arith.select %64, %20, %65 : vector<8x128xi1>, vector<8x128xi32>
    %cst_21 = arith.constant dense<2147483647> : vector<8xi32>
    %67 = vector.multi_reduction <minsi>, %66, %cst_21 [1] : vector<8x128xi32> to vector<8xi32>
    %68 = vector.shape_cast %67 : vector<8xi32> to vector<8x1xi32>
    %69 = vector.broadcast %68 : vector<8x1xi32> to vector<8x128xi32>
    %70 = arith.cmpi eq, %20, %69 : vector<8x128xi32>
    %71 = arith.ori %58, %70 : vector<8x128xi1>
    %cst_22 = arith.constant 0.000000e+00 : f32
    %72 = vector.broadcast %cst_22 : f32 to vector<8x128xf32>
    %73 = arith.select %71, %19, %72 : vector<8x128xi1>, vector<8x128xf32>
    %c0_23 = arith.constant 0 : index
    %c0_24 = arith.constant 0 : index
    %74 = vector.load %arg4[%c0_23, %c0_24] : memref<8x128xf32, #tpu.memory_space<vmem>>, vector<8x128xf32>
    tpu.vector_store %arg4[%c0_23, %c0_24], %73 {strides = array<i32>} : memref<8x128xf32, #tpu.memory_space<vmem>>, vector<8x128xf32>,
    return
  }
  func.func @transform_0(%arg0: i32) -> (i32, i32) {
    %c0_i32 = arith.constant 0 : i32
    %c0_i32_0 = arith.constant 0 : i32
    return %arg0, %c0_i32 : i32, i32
  }
  func.func @transform_1(%arg0: i32) -> (i32, i32) {
    %c0_i32 = arith.constant 0 : i32
    %c0_i32_0 = arith.constant 0 : i32
    %c0_i32_1 = arith.constant 0 : i32
    return %c0_i32, %c0_i32_0 : i32, i32
  }
  func.func @transform_2(%arg0: i32) -> (i32, i32) {
    %c0_i32 = arith.constant 0 : i32
    %c0_i32_0 = arith.constant 0 : i32
    %c0_i32_1 = arith.constant 0 : i32
    return %c0_i32, %c0_i32_0 : i32, i32
  }
  func.func @transform_3(%arg0: i32) -> (i32, i32) {
    %c0_i32 = arith.constant 0 : i32
    %c0_i32_0 = arith.constant 0 : i32
    return %arg0, %c0_i32 : i32, i32
  }
}

</mosaic_0001>

<llo_original>
// kernel: tpu_custom_call.1
$region0: #{tpu_custom_call.1}
  #allocation0 [shape = 'u32[]', space=smem, size = 0x4, offset = 0x4, fixed_abs, tag = 'smem constant byte address 0x4 - core index']
  #allocation1 [shape = 'u32[144,128]{1,0:T(1,128)}', space=vmem, size = 0x12000, scoped, tag = 'internal scratch']
  %s0 = inlined_call_operand.hbm [shape: f32[16,32], index: 0, kind: input, shape index: {}]
  %s1 = inlined_call_operand.hbm [shape: f32[32,128], index: 1, kind: input, shape index: {}]
  %s2 = inlined_call_operand.vmem [shape: f32[1,128], index: 2, kind: input, shape index: {}]
  %s3 = inlined_call_operand.hbm [shape: f32[16,128], index: 3, kind: output, shape index: {}]
  %s4 = sld [smem:[#allocation0]]
  $region53: #{tpu_custom_call.1} parent=0
    _
  %s6 = ssub.s32 1, %s4
  %s7 = scalar_select 0, %s6, %s4
  $region1: #{tpu_custom_call.1} parent=0
    #allocation2 [shape = 'u8[8192]{0}', space=vmem, size = 0x2000, scoped, tag = 'input window, operand 0']
    #allocation3 [shape = 's32[2]{0}', space=sflag, size = 0x8, scoped, tag = 'scoped memory for tpu_custom_call.1']
    #allocation4 [shape = 's32[2]{0}', space=sflag, size = 0x8, scoped, tag = 'scoped memory for tpu_custom_call.1']
    #allocation5 [shape = 'u8[16384]{0}', space=vmem, size = 0x4000, scoped, tag = 'input window, operand 1, single buffered']
    #allocation6 [shape = 's32[1]{0}', space=sflag, size = 0x4, scoped, tag = 'scoped memory for tpu_custom_call.1']
    #allocation7 [shape = 'u8[8192]{0}', space=vmem, size = 0x2000, scoped, tag = 'output window, operand 0']
    %8 = vsyncpa [#allocation3], 0
    %s9 = scalar_lea.sflag [#allocation3], 1
    %10 = vsyncpa %s9, 0
    %11 = vsyncpa [#allocation6], 0
    %12 = vsyncpa [#allocation4], 0
    %s13 = scalar_lea.sflag [#allocation4], 1
    %14 = vsyncpa %s13, 0
    loop: start=0, step=1, limit=4
    $region2: #{tpu_custom_call.1} parent=1 // loop_pre_header
      _
    $region3: #{tpu_custom_call.1} parent=1 // loop_header
      %s16 = sphi 0, %s20
      %p17 = scmp.ge.s32.totalorder %s16, 4
      %s26 = sphi 0, %s28
      %s29 = sphi 0, %s26
      %s30 = sphi 0, %s29
      %s46 = sphi 0, %s30
      %s50 = sphi 0, %s50
      %s52 = sphi 0, %s50
      %s53 = sphi 0, %s52
      %s67 = sphi 0, %s53
      %s71 = sphi 0, %s71
      %s73 = sphi 0, %s71
      %s74 = sphi 0, %s73
      %s88 = sphi 0, %s74
      %s94 = sphi 0, %s96
      %s97 = sphi 0, %s94
      %s98 = sphi 0, %s97
      %s114 = sphi 0, %s98
    $region4: #{tpu_custom_call.1} parent=1 // loop_header_branch
      %19 = sbr.rel (%p17) target = $region8
    $region5: #{tpu_custom_call.1} parent=1 // loop_body
      %s21 = ssub.s32 %s16, 1
      %s22 = ssub.s32 %s16, 2
      %s23 = sadd.s32 %s16, 1
      %s24 = ssub.s32 %s16, %s23
      %p25 = scmp.eq.s32.totalorder %s24, 0
      %s27 = sadd.s32 %s26, 1
      %s28 = scalar_select %p25, %s26, %s27
      %p31 = pneg %p25
      %p32 = scmp.eq.s32.totalorder %s16, 1
      %p33 = por %p31, %p32
      %p34 = scmp.ne.s32.totalorder %s26, %s29
      %p35 = scmp.eq.s32.totalorder %s16, 0
      %p36 = por %p34, %p35
      %p37 = scmp.ne.s32.totalorder %s26, %s29
      %p38 = scmp.eq.s32.totalorder %s21, 1
      %p39 = por %p37, %p38
      %p40 = scmp.ne.s32.totalorder %s29, %s30
      %p41 = scmp.eq.s32.totalorder %s21, 0
      %p42 = por %p40, %p41
      %p43 = scmp.ne.s32.totalorder %s29, %s30
      %p44 = scmp.eq.s32.totalorder %s22, 1
      %p45 = por %p43, %p44
      %p47 = scmp.ne.s32.totalorder %s30, %s46
      %p48 = scmp.eq.s32.totalorder %s22, 0
      %p49 = por %p47, %p48
      %s51 = sadd.s32 %s50, 1
      %p54 = scmp.eq.s32.totalorder %s16, 1
      %p55 = scmp.ne.s32.totalorder %s50, %s52
      %p56 = scmp.eq.s32.totalorder %s16, 0
      %p57 = por %p55, %p56
      %p58 = scmp.ne.s32.totalorder %s50, %s52
      %p59 = scmp.eq.s32.totalorder %s21, 1
      %p60 = por %p58, %p59
      %p61 = scmp.ne.s32.totalorder %s52, %s53
      %p62 = scmp.eq.s32.totalorder %s21, 0
      %p63 = por %p61, %p62
      %p64 = scmp.ne.s32.totalorder %s52, %s53
      %p65 = scmp.eq.s32.totalorder %s22, 1
      %p66 = por %p64, %p65
      %p68 = scmp.ne.s32.totalorder %s53, %s67
      %p69 = scmp.eq.s32.totalorder %s22, 0
      %p70 = por %p68, %p69
      %s72 = sadd.s32 %s71, 1
      %p75 = scmp.eq.s32.totalorder %s16, 1
      %p76 = scmp.ne.s32.totalorder %s71, %s73
      %p77 = scmp.eq.s32.totalorder %s16, 0
      %p78 = por %p76, %p77
      %p79 = scmp.ne.s32.totalorder %s71, %s73
      %p80 = scmp.eq.s32.totalorder %s21, 1
      %p81 = por %p79, %p80
      %p82 = scmp.ne.s32.totalorder %s73, %s74
      %p83 = scmp.eq.s32.totalorder %s21, 0
      %p84 = por %p82, %p83
      %p85 = scmp.ne.s32.totalorder %s73, %s74
      %p86 = scmp.eq.s32.totalorder %s22, 1
      %p87 = por %p85, %p86
      %p89 = scmp.ne.s32.totalorder %s74, %s88
      %p90 = scmp.eq.s32.totalorder %s22, 0
      %p91 = por %p89, %p90
      %s92 = ssub.s32 %s16, %s23
      %p93 = scmp.eq.s32.totalorder %s92, 0
      %s95 = sadd.s32 %s94, 1
      %s96 = scalar_select %p93, %s94, %s95
      %p99 = pneg %p93
      %p100 = scmp.eq.s32.totalorder %s16, 1
      %p101 = por %p99, %p100
      %p102 = scmp.ne.s32.totalorder %s94, %s97
      %p103 = scmp.eq.s32.totalorder %s16, 0
      %p104 = por %p102, %p103
      %p105 = scmp.ne.s32.totalorder %s94, %s97
      %p106 = scmp.eq.s32.totalorder %s21, 1
      %p107 = por %p105, %p106
      %p108 = scmp.ne.s32.totalorder %s97, %s98
      %p109 = scmp.eq.s32.totalorder %s21, 0
      %p110 = por %p108, %p109
      %p111 = scmp.ne.s32.totalorder %s97, %s98
      %p112 = scmp.eq.s32.totalorder %s22, 1
      %p113 = por %p111, %p112
      %p115 = scmp.ne.s32.totalorder %s98, %s114
      %p116 = scmp.eq.s32.totalorder %s22, 0
      %p117 = por %p115, %p116
      %p118 = scmp.le.s32.totalorder 1, %s16
      %p119 = scmp.lt.s32.totalorder %s16, 3
      %p120 = pnand %p118, %p119
      %p121 = pneg %p120
      // Predicated region
      $region9: #{tpu_custom_call.1} parent=5 // pred_check
        _
      $region10: #{tpu_custom_call.1} parent=5 // pred_check_branch
        %123 = sbr.rel (%p120) target = $region12
      $region11: #{tpu_custom_call.1} parent=5 // pred_region
        %s124 = ssub.s32 %s16, 1
        // Predicated region
        $region13: #{tpu_custom_call.1} parent=11 // pred_check
          %p125 = pneg %p63
        $region14: #{tpu_custom_call.1} parent=11 // pred_check_branch
          %127 = sbr.rel (%p125) target = $region16
        $region15: #{tpu_custom_call.1} parent=11 // pred_region
          %s129 = ssub.s32 512, 512
          %130 = vsyncadd [#allocation6], %s129
          %s131 = sshll.u32 [#allocation5], 4
          %s132 = int_to_ptr.vmem [resolvable:$true] %s131
          %137 = dma.hbm_to_vmem [thread:$0]  %s1, 512, %s132, [#allocation6], 128, 128, 8
        $region16: #{tpu_custom_call.1} parent=11 // pred_fallthru
          _
        // Predicated region
        $region17: #{tpu_custom_call.1} parent=11 // pred_check
          %p138 = pneg %p84
        $region18: #{tpu_custom_call.1} parent=11 // pred_check_branch
          %140 = sbr.rel (%p138) target = $region20
        $region19: #{tpu_custom_call.1} parent=11 // pred_region
          _
        $region20: #{tpu_custom_call.1} parent=11 // pred_fallthru
          _
      $region12: #{tpu_custom_call.1} parent=5 // pred_fallthru
        _
      %p141 = scmp.lt.s32.totalorder %s16, 2
      // Predicated region
      $region21: #{tpu_custom_call.1} parent=5 // pred_check
        %p142 = pneg %p141
      $region22: #{tpu_custom_call.1} parent=5 // pred_check_branch
        %144 = sbr.rel (%p142) target = $region24
      $region23: #{tpu_custom_call.1} parent=5 // pred_region
        // Predicated region
        $region25: #{tpu_custom_call.1} parent=23 // pred_check
          %p145 = pneg %p36
        $region26: #{tpu_custom_call.1} parent=23 // pred_check_branch
          %147 = sbr.rel (%p145) target = $region28
        $region27: #{tpu_custom_call.1} parent=23 // pred_region
          %s148 = sand.u32 %s26, 1
          %s149 = scalar_lea.sflag [#allocation3], %s148
          %s150 = sand.u32 %s26, 1
          %s151 = smul.addr %s150, 8
          %s152 = scalar_lea.vmem [#allocation2], %s151
          %s154 = ssub.s32 128, 128
          %155 = vsyncadd %s149, %s154
          %s156 = smul.addr %s16, 128
          %s157 = scalar_lea.hbm %s0, %s156
          %s159 = sshll.u32 %s152, 4
          %s160 = int_to_ptr.vmem [resolvable:$true] %s159
          %162 = dma.hbm_to_vmem [thread:$0]  %s157, 128, %s160, %s149
        $region28: #{tpu_custom_call.1} parent=23 // pred_fallthru
          _
      $region24: #{tpu_custom_call.1} parent=5 // pred_fallthru
        _
      %p163 = scmp.le.s32.totalorder 1, %s16
      %p164 = scmp.lt.s32.totalorder %s16, 3
      %p165 = pnand %p163, %p164
      %p166 = pneg %p165
      // Predicated region
      $region29: #{tpu_custom_call.1} parent=5 // pred_check
        _
      $region30: #{tpu_custom_call.1} parent=5 // pred_check_branch
        %168 = sbr.rel (%p165) target = $region32
      $region31: #{tpu_custom_call.1} parent=5 // pred_region
        %s169 = ssub.s32 %s16, 1
        %s170 = sand.u32 %s29, 1
        %s171 = scalar_lea.sflag [#allocation3], %s170
        %s172 = sand.u32 %s29, 1
        %s173 = smul.addr %s172, 8
        %s174 = scalar_lea.vmem [#allocation2], %s173
        // Predicated region
        $region33: #{tpu_custom_call.1} parent=31 // pred_check
          %p175 = pneg %p42
        $region34: #{tpu_custom_call.1} parent=31 // pred_check_branch
          %177 = sbr.rel (%p175) target = $region36
        $region35: #{tpu_custom_call.1} parent=31 // pred_region
          %178 = dma.done %s171, 128
        $region36: #{tpu_custom_call.1} parent=31 // pred_fallthru
          _
        // Predicated region
        $region37: #{tpu_custom_call.1} parent=31 // pred_check
          %p179 = pneg %p63
        $region38: #{tpu_custom_call.1} parent=31 // pred_check_branch
          %181 = sbr.rel (%p179) target = $region40
        $region39: #{tpu_custom_call.1} parent=31 // pred_region
          %182 = dma.done [#allocation6], 512
        $region40: #{tpu_custom_call.1} parent=31 // pred_fallthru
          _
        %s183 = sand.u32 %s29, 1
        %s184 = scalar_lea.sflag [#allocation3], %s183
        %s185 = sand.u32 %s29, 1
        %s186 = smul.addr %s185, 8
        %s187 = scalar_lea.vmem [#allocation2], %s186
        %p188 = pneg %p42
        %p189 = pneg %p39
        %p190 = pneg %p63
        %p191 = pneg %p60
        %p192 = pneg %p84
        %p193 = pneg %p81
        %p194 = pneg %p110
        %p195 = pneg %p107
        %s196 = sand.u32 %s97, 1
        %s197 = scalar_lea.sflag [#allocation4], %s196
        %s198 = sand.u32 %s97, 1
        %s199 = smul.addr %s198, 8
        %s200 = scalar_lea.vmem [#allocation7], %s199
        %v201 = vld [vmem:[%s174] sm:$0xff]
        %v202 = vld [vmem:[#allocation5] sm:$0xff]
        %v203 = vld [vmem:[#allocation5 + $0x8] sm:$0xff]
        %v204 = vld [vmem:[#allocation5 + $0x10] sm:$0xff]
        %v205 = vld [vmem:[#allocation5 + $0x18] sm:$0xff]
        %v206 = vld [vmem:[%s2] sm:$0x1]
        %v208 = vlaneseq
        %v209 = vshrl.u32 %v208, 7
        %v210 = vsub.s32 0, %v209
        %v211 = vrot.slane %v206, %v210
        %vm213 = vcmask 261120
        %v215 = vsel %vm213, %v201, 0
        %217 = vmatprep.subr.mxu0 0.0
        %218 = vmatpush1.msra.mxu0 0.0
        %219 = vmatprep.subr.mxu0 0.0
        %220 = vmatpush1.msra.mxu0 0.0
        %221 = vmatprep.subr.mxu0 0.0
        %222 = vmatpush1.msra.mxu0 0.0
        %223 = vmatprep.subr.mxu0 0.0
        %224 = vmatpush1.msra.mxu0 0.0
        %225 = vmatprep.subr.mxu0 0.0
        %226 = vmatpush1.msra.mxu0 0.0
        %227 = vmatprep.subr.mxu0 0.0
        %228 = vmatpush1.msra.mxu0 0.0
        %229 = vmatprep.subr.mxu0 0.0
        %230 = vmatpush1.msra.mxu0 0.0
        %231 = vmatprep.subr.mxu0 0.0
        %232 = vmatpush1.msra.mxu0 0.0
        %233 = vmatprep.subr.mxu0 0.0
        %234 = vmatpush1.msra.mxu0 0.0
        %235 = vmatprep.subr.mxu0 0.0
        %236 = vmatpush1.msra.mxu0 0.0
        %237 = vmatprep.subr.mxu0 0.0
        %238 = vmatpush1.msra.mxu0 0.0
        %239 = vmatprep.subr.mxu0 0.0
        %240 = vmatpush1.msra.mxu0 0.0
        %241 = vmatprep.subr.mxu0 0.0
        %242 = vmatpush1.msra.mxu0 %v205
        %243 = vmatprep.subr.mxu0 0.0
        %244 = vmatpush1.msra.mxu0 %v204
        %245 = vmatprep.subr.mxu0 0.0
        %246 = vmatpush1.msra.mxu0 %v203
        %247 = vmatprep.subr.mxu0 0.0
        %248 = vmatpush1.msra.mxu0 %v202
        %249 = vmatprep.subr.mxu0 0.0
        %250 = vmatpush2.msra.mxu0 0.0
        %251 = vmatprep.subr.mxu0 0.0
        %252 = vmatpush2.msra.mxu0 0.0
        %253 = vmatprep.subr.mxu0 0.0
        %254 = vmatpush2.msra.mxu0 0.0
        %255 = vmatprep.subr.mxu0 0.0
        %256 = vmatpush2.msra.mxu0 0.0
        %257 = vmatprep.subr.mxu0 0.0
        %258 = vmatpush2.msra.mxu0 0.0
        %259 = vmatprep.subr.mxu0 0.0
        %260 = vmatpush2.msra.mxu0 0.0
        %261 = vmatprep.subr.mxu0 0.0
        %262 = vmatpush2.msra.mxu0 0.0
        %263 = vmatprep.subr.mxu0 0.0
        %264 = vmatpush2.msra.mxu0 0.0
        %265 = vmatprep.subr.mxu0 0.0
        %266 = vmatpush2.msra.mxu0 0.0
        %267 = vmatprep.subr.mxu0 0.0
        %268 = vmatpush2.msra.mxu0 0.0
        %269 = vmatprep.subr.mxu0 0.0
        %270 = vmatpush2.msra.mxu0 0.0
        %271 = vmatprep.subr.mxu0 0.0
        %272 = vmatpush2.msra.mxu0 0.0
        %273 = vmatprep.subr.mxu0 0.0
        %274 = vmatpush2.msra.mxu0 0.0
        %275 = vmatprep.subr.mxu0 0.0
        %276 = vmatpush2.msra.mxu0 0.0
        %277 = vmatprep.subr.mxu0 0.0
        %278 = vmatpush2.msra.mxu0 0.0
        %279 = vmatprep.subr.mxu0 0.0
        %280 = vmatpush2.msra.mxu0 0.0
        %281 = vmatprep.mubr.f32.mxu0 0.0
        %282 = vmatmul.mubr.f32.gmra.mxu0 %v215
        %v283 = vpop.f32.mrf.mxu0
        %v284 = vadd.f32 %v211, %v283
        %v285 = vpop.f32.mrf.mxu0
        %286 = vdwg.mxu0
        %287 = vmax.xlane.f32.xlu0 %v284
        %v288 = vpop.xlane.xlu0 %287
        %v289 = vsub.f32 %v284, %v288
        %v290 = vmul.f32 %v289, 1.442695
        %v291 = vpow.pop %v290
        %292 = vadd.xlane.f32.xlu0 %v291
        %v293 = vpop.xlane.xlu0 %292
        %v294 = vrcp.pop %v293
        %v295 = vmul.f32 %v293, %v294
        %v296 = vsub.f32 2.0, %v295
        %v297 = vmul.f32 %v294, %v296
        %v298 = vmul.f32 %v291, %v297
        %v299 = vlaneseq
        %v300 = vand.u32 %v299, 127
        %301 = vmax.xlane.f32.xlu0 %v298
        %v302 = vpop.xlane.xlu0 %301
        %vm303 = vcmp.eq.f32.partialorder %v298, %v302
        %v304 = vsel %vm303, %v300, 128
        %v305 = vand.u32 %v304, 65535
        %v306 = vshra.s32 %v304, 16
        %v307 = vcvt.s32.f32 %v305
        %v308 = vcvt.s32.f32 %v306
        %309 = vmin.xlane.f32.xlu0 %v308
        %v310 = vpop.xlane.xlu0 %309
        %vm311 = vcmp.eq.f32.partialorder %v308, %v310
        %v312 = vsel %vm311, %v307, inf
        %313 = vmin.xlane.f32.xlu0 %v312
        %v314 = vpop.xlane.xlu0 %313
        %v315 = vcvt.f32.s32 %v314
        %v316 = vcvt.f32.s32 %v310
        %v317 = vshll.u32 %v316, 16
        %v318 = vadd.s32 %v317, %v315
        %vm319 = vcmp.eq.s32.totalorder %v300, %v318
        %v320 = vsel %vm319, -1.0, %v298
        %321 = vmax.xlane.f32.xlu0 %v320
        %v322 = vpop.xlane.xlu0 %321
        %vm323 = vcmp.eq.f32.partialorder %v320, %v322
        %v324 = vsel %vm323, %v300, 128
        %v325 = vand.u32 %v324, 65535
        %v326 = vshra.s32 %v324, 16
        %v327 = vcvt.s32.f32 %v325
        %v328 = vcvt.s32.f32 %v326
        %329 = vmin.xlane.f32.xlu0 %v328
        %v330 = vpop.xlane.xlu0 %329
        %vm331 = vcmp.eq.f32.partialorder %v328, %v330
        %v332 = vsel %vm331, %v327, inf
        %333 = vmin.xlane.f32.xlu0 %v332
        %v334 = vpop.xlane.xlu0 %333
        %v335 = vcvt.f32.s32 %v334
        %v336 = vcvt.f32.s32 %v330
        %v337 = vshll.u32 %v336, 16
        %v338 = vadd.s32 %v337, %v335
        %vm339 = vcmp.eq.s32.totalorder %v300, %v338
        %vm340 = vmor %vm319, %vm339
        %v341 = vsel %vm339, -1.0, %v320
        %342 = vmax.xlane.f32.xlu0 %v341
        %v343 = vpop.xlane.xlu0 %342
        %vm344 = vcmp.eq.f32.partialorder %v341, %v343
        %v345 = vsel %vm344, %v300, 128
        %v346 = vand.u32 %v345, 65535
        %v347 = vshra.s32 %v345, 16
        %v348 = vcvt.s32.f32 %v346
        %v349 = vcvt.s32.f32 %v347
        %350 = vmin.xlane.f32.xlu0 %v349
        %v351 = vpop.xlane.xlu0 %350
        %vm352 = vcmp.eq.f32.partialorder %v349, %v351
        %v353 = vsel %vm352, %v348, inf
        %354 = vmin.xlane.f32.xlu0 %v353
        %v355 = vpop.xlane.xlu0 %354
        %v356 = vcvt.f32.s32 %v355
        %v357 = vcvt.f32.s32 %v351
        %v358 = vshll.u32 %v357, 16
        %v359 = vadd.s32 %v358, %v356
        %vm360 = vcmp.eq.s32.totalorder %v300, %v359
        %vm361 = vmor %vm340, %vm360
        %v362 = vsel %vm360, -1.0, %v341
        %363 = vmax.xlane.f32.xlu0 %v362
        %v364 = vpop.xlane.xlu0 %363
        %vm365 = vcmp.eq.f32.partialorder %v362, %v364
        %v366 = vsel %vm365, %v300, 128
        %v367 = vand.u32 %v366, 65535
        %v368 = vshra.s32 %v366, 16
        %v369 = vcvt.s32.f32 %v367
        %v370 = vcvt.s32.f32 %v368
        %371 = vmin.xlane.f32.xlu0 %v370
        %v372 = vpop.xlane.xlu0 %371
        %vm373 = vcmp.eq.f32.partialorder %v370, %v372
        %v374 = vsel %vm373, %v369, inf
        %375 = vmin.xlane.f32.xlu0 %v374
        %v376 = vpop.xlane.xlu0 %375
        %v377 = vcvt.f32.s32 %v376
        %v378 = vcvt.f32.s32 %v372
        %v379 = vshll.u32 %v378, 16
        %v380 = vadd.s32 %v379, %v377
        %vm381 = vcmp.eq.s32.totalorder %v300, %v380
        %vm382 = vmor %vm361, %vm381
        %v383 = vsel %vm382, %v298, 0.0
        %384 = vst [vmem:[%s200] sm:$0xff] %v383
        %s385 = sand.u32 %s97, 1
        %s386 = scalar_lea.sflag [#allocation4], %s385
        %s387 = sand.u32 %s97, 1
        %s388 = smul.addr %s387, 8
        %s389 = scalar_lea.vmem [#allocation7], %s388
        // Predicated region
        $region41: #{tpu_custom_call.1} parent=31 // pred_check
          %p390 = pneg %p107
        $region42: #{tpu_custom_call.1} parent=31 // pred_check_branch
          %392 = sbr.rel (%p390) target = $region44
        $region43: #{tpu_custom_call.1} parent=31 // pred_region
          %s394 = ssub.s32 128, 128
          %395 = vsyncadd %s386, %s394
          %s396 = smul.addr %s21, 128
          %s397 = scalar_lea.hbm %s3, %s396
          %s399 = sshll.u32 %s389, 4
          %s400 = int_to_ptr.vmem [resolvable:$true] %s399
          %402 = dma.vmem_to_hbm [thread:$0]  %s400, 128, %s397, %s386
        $region44: #{tpu_custom_call.1} parent=31 // pred_fallthru
          _
      $region32: #{tpu_custom_call.1} parent=5 // pred_fallthru
        _
      %p403 = scmp.le.s32.totalorder 2, %s16
      // Predicated region
      $region45: #{tpu_custom_call.1} parent=5 // pred_check
        %p404 = pneg %p403
      $region46: #{tpu_custom_call.1} parent=5 // pred_check_branch
        %406 = sbr.rel (%p404) target = $region48
      $region47: #{tpu_custom_call.1} parent=5 // pred_region
        %s407 = ssub.s32 %s16, 2
        // Predicated region
        $region49: #{tpu_custom_call.1} parent=47 // pred_check
          %p408 = pneg %p113
        $region50: #{tpu_custom_call.1} parent=47 // pred_check_branch
          %410 = sbr.rel (%p408) target = $region52
        $region51: #{tpu_custom_call.1} parent=47 // pred_region
          %s411 = sand.u32 %s98, 1
          %s412 = scalar_lea.sflag [#allocation4], %s411
          %s413 = sand.u32 %s98, 1
          %s414 = smul.addr %s413, 8
          %s415 = scalar_lea.vmem [#allocation7], %s414
          %416 = dma.done %s412, 128
        $region52: #{tpu_custom_call.1} parent=47 // pred_fallthru
          _
      $region48: #{tpu_custom_call.1} parent=5 // pred_fallthru
        _
    $region6: #{tpu_custom_call.1} parent=1 // loop_footer
      %s20 = sadd.s32 1, %s16
    $region7: #{tpu_custom_call.1} parent=1 // loop_footer_branch
      %15 = sbr.rel target = $region3
    $region8: #{tpu_custom_call.1} parent=1 // loop_exit
      _
    %417 = vsyncpa [#allocation3], 1
    %s418 = scalar_lea.sflag [#allocation3], 1
    %419 = vsyncpa %s418, 1
    %420 = vsyncpa [#allocation6], 1
    %421 = vsyncpa [#allocation4], 1
    %s422 = scalar_lea.sflag [#allocation4], 1
    %423 = vsyncpa %s422, 1

</llo_original>
